<compile_context>
chip_gen: v6e
topology: v6e:2x2x1
jax: 0.10.0
libtpu: 0.0.40
codegen_flags: <defaults>
</compile_context>

<pallas_src>
import functools

import jax
import jax.numpy as jnp
from jax.experimental import pallas as pl
from jax.experimental.pallas import tpu as pltpu

LN_EPS = 1e-5  # PyTorch nn.LayerNorm default


def _round_up(n, m):
    return ((n + m - 1) // m) * m


def _ln_relu(h, gamma, beta):
    mu = jnp.mean(h, axis=-1, keepdims=True)
    var = jnp.mean((h - mu) * (h - mu), axis=-1, keepdims=True)
    hn = (h - mu) * jax.lax.rsqrt(var + LN_EPS)
    return jnp.maximum(hn * gamma + beta, 0.0)


def _critic_kernel(d1, d2, x_ref, w1_ref, w2_ref, vec_ref, value_ref):
    vec = vec_ref[...]

    # Unpack the small parameter vectors once (static row slices; hoisted so
    # each broadcast source is materialized a single time).
    b1 = vec[0:1, :d1]
    g1 = vec[1:2, :d1]
    be1 = vec[2:3, :d1]
    b2 = vec[3:4, :d2]
    g2 = vec[4:5, :d2]
    be2 = vec[5:6, :d2]
    w3r = vec[6:7, :d2]   # output head as a (1, d2) row vector
    b3 = vec[7:8, 0:1]    # scalar bias

    # Layer 1: Linear -> LayerNorm -> ReLU.  MXU runs at native bf16 rate,
    # accumulation + all element-wise work stays f32.
    x = x_ref[...].astype(jnp.bfloat16)
    h = jnp.dot(x, w1_ref[...], preferred_element_type=jnp.float32) + b1
    h = _ln_relu(h, g1, be1)

    # Hidden layer: Linear -> LayerNorm -> ReLU.
    h = jnp.dot(h.astype(jnp.bfloat16), w2_ref[...],
                preferred_element_type=jnp.float32) + b2
    h = _ln_relu(h, g2, be2)

    # Output head (d2 -> 1): VPU broadcast-mul + XLU lane reduction (f32).
    value_ref[...] = jnp.sum(h * w3r, axis=-1, keepdims=True) + b3


def _pack_params(params):
    """Pack (w1,b1,g1,be1,w2,b2,g2,be2,w3,b3) -> (w1_bf16, w2_bf16, packed_vec_f32)."""
    (w1, b1, g1, be1, w2, b2, g2, be2, w3, b3) = params
    d1 = w1.shape[1]
    d2 = w2.shape[1]
    vw = max(d1, d2)

    def row(v, n):
        v = v.reshape(1, -1).astype(jnp.float32)
        return jnp.pad(v, ((0, 0), (0, vw - n)))

    vec = jnp.concatenate(
        [row(b1, d1), row(g1, d1), row(be1, d1),
         row(b2, d2), row(g2, d2), row(be2, d2),
         row(w3.reshape(1, d2), d2), row(b3, 1)],
        axis=0)  # (8, vw): a single (8,128)-padded f32 tile
    return w1.astype(jnp.bfloat16), w2.astype(jnp.bfloat16), vec


def critic_forward(x, params, *, tb=None):
    """Returns (softmax output [B,1] — matches the PyTorch module, raw critic value [B,1])."""
    w1, w2, vec = _pack_params(params)
    in_dim, d1 = w1.shape
    d2 = w2.shape[1]
    vw = vec.shape[1]
    B = x.shape[0]

    if tb is None:
        # Batch tile: bounded by ~512 KiB of x-tile per step (pipeline stays
        # hidden even on v5e HBM) and by 4096 rows; multiple of 8 sublanes.
        row_bytes = max(1, in_dim * x.dtype.itemsize)
        budget_rows = max(8, min(4096, (512 * 1024) // row_bytes))
        tb = min(_round_up(B, 8), _round_up(budget_rows, 8))
        # v7x: keep >= 2 grid steps for mid/large batches so ("parallel",)
        # can split the batch across both TensorCores.
        if B >= 16:
            tb = min(tb, _round_up(pl.cdiv(B, 2), 8))
    grid = (pl.cdiv(B, tb),)

    flops = 2 * B * (in_dim * d1 + d1 * d2 + d2) + 12 * B * (d1 + d2)
    bytes_accessed = int(x.dtype.itemsize * B * in_dim          # x
                         + 2 * (in_dim * d1 + d1 * d2)          # bf16 weights
                         + 4 * 8 * vw                           # packed vec
                         + 4 * B)                               # value out
    cost = pl.CostEstimate(flops=int(flops),
                           transcendentals=int(2 * B),          # two rsqrt / row
                           bytes_accessed=bytes_accessed)

    kernel = functools.partial(_critic_kernel, d1, d2)

    value = pl.pallas_call(
        kernel,
        out_shape=jax.ShapeDtypeStruct((B, 1), jnp.float32),
        grid_spec=pltpu.PrefetchScalarGridSpec(
            num_scalar_prefetch=0,
            grid=grid,
            in_specs=[
                pl.BlockSpec((tb, in_dim), lambda i: (i, 0)),   # x: tiled over batch
                pl.BlockSpec((in_dim, d1), lambda i: (0, 0)),   # w1: VMEM-resident (bf16)
                pl.BlockSpec((d1, d2), lambda i: (0, 0)),       # w2: VMEM-resident (bf16)
                pl.BlockSpec((8, vw), lambda i: (0, 0)),        # packed small params (f32)
            ],
            out_specs=pl.BlockSpec((tb, 1), lambda i: (i, 0)),
        ),
        compiler_params=pltpu.CompilerParams(
            dimension_semantics=("parallel",)),   # split batch across v7x's 2 TCs
        cost_estimate=cost,
    )(x, w1, w2, vec)

    # nn.Softmax(dim=-1) over a size-1 axis is identically 1.0 — produce the
    # module-matching output as a constant in the wrapper (exact, zero kernel cost).
    out = jnp.ones((B, 1), jnp.float32)
    return out, value


def init_params(key, in_dim, d1, d2):
    """Deterministic synthetic init (PyTorch-Linear-style uniform bounds)."""
    ks = jax.random.split(key, 6)

    def linear(kw, kb, fan_in, fan_out):
        bound = 1.0 / jnp.sqrt(jnp.float32(fan_in))
        w = jax.random.uniform(kw, (fan_in, fan_out), jnp.float32, -bound, bound)
        b = jax.random.uniform(kb, (1, fan_out), jnp.float32, -bound, bound)
        return w, b

    w1, b1 = linear(ks[0], ks[1], in_dim, d1)
    w2, b2 = linear(ks[2], ks[3], d1, d2)
    w3, b3 = linear(ks[4], ks[5], d2, 1)
    # LayerNorm affine params: PyTorch default init (ones / zeros).
    g1, be1 = jnp.ones((1, d1), jnp.float32), jnp.zeros((1, d1), jnp.float32)
    g2, be2 = jnp.ones((1, d2), jnp.float32), jnp.zeros((1, d2), jnp.float32)
    return (w1, b1, g1, be1, w2, b2, g2, be2, w3, b3)


def reference_forward(x, params):
    """Pure-JAX f32 reference for correctness check. Returns (softmax_out, raw value)."""
    (w1, b1, g1, be1, w2, b2, g2, be2, w3, b3) = params
    h = x @ w1 + b1
    h = _ln_relu(h, g1, be1)
    h = h @ w2 + b2
    h = _ln_relu(h, g2, be2)
    v = h @ w3 + b3
    return jax.nn.softmax(v, axis=-1), v


if __name__ == "__main__":
    # Small shapes consistent with the module: input_dims=(32,),
    # layer_1_dim=64, hidden_layer_dims=[64], batch=8.
    B, IN_DIM, D1, D2 = 8, 32, 64, 64

    key = jax.random.PRNGKey(0)
    k_x, k_p, k_x2 = jax.random.split(key, 3)
    x = jax.random.normal(k_x, (B, IN_DIM), jnp.float32)
    params = init_params(k_p, IN_DIM, D1, D2)

    out, value = critic_forward(x, params)
    out = jax.block_until_ready(out)
    value = jax.block_until_ready(value)

    ref_out, ref_value = reference_forward(x, params)
    assert out.shape == (B, 1) and value.shape == (B, 1)
    # Module output: softmax over a size-1 axis is identically 1.0 (exact).
    assert jnp.allclose(out, jnp.ones((B, 1), jnp.float32), atol=1e-6)
    assert jnp.allclose(out, ref_out, atol=1e-6)
    # Raw critic value vs. the f32 reference MLP (bf16 matmul inputs -> loose tol).
    assert jnp.allclose(value, ref_value, atol=5e-2, rtol=5e-2), (value, ref_value)

    # Second check: unaligned batch exercising the no-pad boundary-masked
    # blocks and a >= 2-step grid (v7x two-TensorCore split path).
    B2 = 20
    x2 = jax.random.normal(k_x2, (B2, IN_DIM), jnp.float32)
    out2, value2 = critic_forward(x2, params)
    out2 = jax.block_until_ready(out2)
    value2 = jax.block_until_ready(value2)
    ref_out2, ref_value2 = reference_forward(x2, params)
    assert out2.shape == (B2, 1) and value2.shape == (B2, 1)
    assert jnp.allclose(out2, ref_out2, atol=1e-6)
    assert jnp.allclose(value2, ref_value2, atol=5e-2, rtol=5e-2), (value2, ref_value2)

    print("KERNEL_OK")
</pallas_src>

<mosaic_0001>
module attributes {stable_mosaic.version = 11 : i64} {
  func.func @_critic_kernel(%arg0: i32, %arg1: memref<8x32xf32, #tpu.memory_space<vmem>>, %arg2: memref<32x64xbf16, #tpu.memory_space<vmem>>, %arg3: memref<64x64xbf16, #tpu.memory_space<vmem>>, %arg4: memref<8x64xf32, #tpu.memory_space<vmem>>, %arg5: memref<8x1xf32, #tpu.memory_space<vmem>>) attributes {dimension_semantics = [#tpu.dimension_semantics<parallel>], iteration_bounds = array<i64: 1>, scalar_prefetch = 0 : i64, scratch_operands = 0 : i64, tpu.core_type = #tpu.core_type<tc>, window_params = [{transform_indices = @transform_0, window_bounds = array<i64: 8, 32>}, {pipeline_mode = #tpu.pipeline_mode<synchronous>, transform_indices = @transform_1, window_bounds = array<i64: 32, 64>}, {pipeline_mode = #tpu.pipeline_mode<synchronous>, transform_indices = @transform_2, window_bounds = array<i64: 64, 64>}, {pipeline_mode = #tpu.pipeline_mode<synchronous>, transform_indices = @transform_3, window_bounds = array<i64: 8, 64>}, {transform_indices = @transform_4, window_bounds = array<i64: 8, 1>}]} {
    %c0 = arith.constant 0 : index
    %c0_0 = arith.constant 0 : index
    %0 = vector.load %arg4[%c0, %c0_0] : memref<8x64xf32, #tpu.memory_space<vmem>>, vector<8x64xf32>
    %1 = vector.extract_strided_slice %0 {offsets = [0, 0], sizes = [1, 64], strides = [1, 1]} : vector<8x64xf32> to vector<1x64xf32>
    %2 = vector.extract_strided_slice %0 {offsets = [1, 0], sizes = [1, 64], strides = [1, 1]} : vector<8x64xf32> to vector<1x64xf32>
    %3 = vector.extract_strided_slice %0 {offsets = [2, 0], sizes = [1, 64], strides = [1, 1]} : vector<8x64xf32> to vector<1x64xf32>
    %4 = vector.extract_strided_slice %0 {offsets = [3, 0], sizes = [1, 64], strides = [1, 1]} : vector<8x64xf32> to vector<1x64xf32>
    %5 = vector.extract_strided_slice %0 {offsets = [4, 0], sizes = [1, 64], strides = [1, 1]} : vector<8x64xf32> to vector<1x64xf32>
    %6 = vector.extract_strided_slice %0 {offsets = [5, 0], sizes = [1, 64], strides = [1, 1]} : vector<8x64xf32> to vector<1x64xf32>
    %7 = vector.extract_strided_slice %0 {offsets = [6, 0], sizes = [1, 64], strides = [1, 1]} : vector<8x64xf32> to vector<1x64xf32>
    %8 = vector.extract_strided_slice %0 {offsets = [7, 0], sizes = [1, 1], strides = [1, 1]} : vector<8x64xf32> to vector<1x1xf32>
    %c0_1 = arith.constant 0 : index
    %c0_2 = arith.constant 0 : index
    %9 = vector.load %arg1[%c0_1, %c0_2] : memref<8x32xf32, #tpu.memory_space<vmem>>, vector<8x32xf32>
    %10 = arith.truncf %9 : vector<8x32xf32> to vector<8x32xbf16>
    %c0_3 = arith.constant 0 : index
    %c0_4 = arith.constant 0 : index
    %11 = vector.load %arg2[%c0_3, %c0_4] : memref<32x64xbf16, #tpu.memory_space<vmem>>, vector<32x64xbf16>
    %cst = arith.constant dense<0.000000e+00> : vector<8x64xf32>
    %12 = tpu.matmul %10, %11, %cst {dimension_numbers = #tpu.dot_dimension_numbers<[1], [0], [0], [1], [0, 0, 1, 1], [], []>} : vector<8x32xbf16>, vector<32x64xbf16>, vector<8x64xf32> -> vector<8x64xf32>
    %13 = vector.broadcast %1 : vector<1x64xf32> to vector<8x64xf32>
    %14 = arith.addf %12, %13 : vector<8x64xf32>
    %cst_5 = arith.constant dense<0.000000e+00> : vector<8xf32>
    %15 = vector.multi_reduction <add>, %14, %cst_5 [1] : vector<8x64xf32> to vector<8xf32>
    %16 = vector.shape_cast %15 : vector<8xf32> to vector<8x1xf32>
    %cst_6 = arith.constant 6.400000e+01 : f32
    %17 = vector.broadcast %cst_6 : f32 to vector<8x1xf32>
    %18 = arith.divf %16, %17 : vector<8x1xf32>
    %19 = vector.broadcast %18 : vector<8x1xf32> to vector<8x64xf32>
    %20 = arith.subf %14, %19 : vector<8x64xf32>
    %21 = vector.broadcast %18 : vector<8x1xf32> to vector<8x64xf32>
    %22 = arith.subf %14, %21 : vector<8x64xf32>
    %23 = arith.mulf %20, %22 : vector<8x64xf32>
    %cst_7 = arith.constant dense<0.000000e+00> : vector<8xf32>
    %24 = vector.multi_reduction <add>, %23, %cst_7 [1] : vector<8x64xf32> to vector<8xf32>
    %25 = vector.shape_cast %24 : vector<8xf32> to vector<8x1xf32>
    %cst_8 = arith.constant 6.400000e+01 : f32
    %26 = vector.broadcast %cst_8 : f32 to vector<8x1xf32>
    %27 = arith.divf %25, %26 : vector<8x1xf32>
    %28 = vector.broadcast %18 : vector<8x1xf32> to vector<8x64xf32>
    %29 = arith.subf %14, %28 : vector<8x64xf32>
    %cst_9 = arith.constant 9.99999974E-6 : f32
    %30 = vector.broadcast %cst_9 : f32 to vector<8x1xf32>
    %31 = arith.addf %27, %30 : vector<8x1xf32>
    %32 = math.rsqrt %31 : vector<8x1xf32>
    %33 = vector.broadcast %32 : vector<8x1xf32> to vector<8x64xf32>
    %34 = arith.mulf %29, %33 : vector<8x64xf32>
    %35 = vector.broadcast %2 : vector<1x64xf32> to vector<8x64xf32>
    %36 = arith.mulf %34, %35 : vector<8x64xf32>
    %37 = vector.broadcast %3 : vector<1x64xf32> to vector<8x64xf32>
    %38 = arith.addf %36, %37 : vector<8x64xf32>
    %cst_10 = arith.constant 0.000000e+00 : f32
    %39 = vector.broadcast %cst_10 : f32 to vector<8x64xf32>
    %40 = arith.maximumf %38, %39 : vector<8x64xf32>
    %41 = arith.truncf %40 : vector<8x64xf32> to vector<8x64xbf16>
    %c0_11 = arith.constant 0 : index
    %c0_12 = arith.constant 0 : index
    %42 = vector.load %arg3[%c0_11, %c0_12] : memref<64x64xbf16, #tpu.memory_space<vmem>>, vector<64x64xbf16>
    %cst_13 = arith.constant dense<0.000000e+00> : vector<8x64xf32>
    %43 = tpu.matmul %41, %42, %cst_13 {dimension_numbers = #tpu.dot_dimension_numbers<[1], [0], [0], [1], [0, 0, 1, 1], [], []>} : vector<8x64xbf16>, vector<64x64xbf16>, vector<8x64xf32> -> vector<8x64xf32>
    %44 = vector.broadcast %4 : vector<1x64xf32> to vector<8x64xf32>
    %45 = arith.addf %43, %44 : vector<8x64xf32>
    %cst_14 = arith.constant dense<0.000000e+00> : vector<8xf32>
    %46 = vector.multi_reduction <add>, %45, %cst_14 [1] : vector<8x64xf32> to vector<8xf32>
    %47 = vector.shape_cast %46 : vector<8xf32> to vector<8x1xf32>
    %cst_15 = arith.constant 6.400000e+01 : f32
    %48 = vector.broadcast %cst_15 : f32 to vector<8x1xf32>
    %49 = arith.divf %47, %48 : vector<8x1xf32>
    %50 = vector.broadcast %49 : vector<8x1xf32> to vector<8x64xf32>
    %51 = arith.subf %45, %50 : vector<8x64xf32>
    %52 = vector.broadcast %49 : vector<8x1xf32> to vector<8x64xf32>
    %53 = arith.subf %45, %52 : vector<8x64xf32>
    %54 = arith.mulf %51, %53 : vector<8x64xf32>
    %cst_16 = arith.constant dense<0.000000e+00> : vector<8xf32>
    %55 = vector.multi_reduction <add>, %54, %cst_16 [1] : vector<8x64xf32> to vector<8xf32>
    %56 = vector.shape_cast %55 : vector<8xf32> to vector<8x1xf32>
    %cst_17 = arith.constant 6.400000e+01 : f32
    %57 = vector.broadcast %cst_17 : f32 to vector<8x1xf32>
    %58 = arith.divf %56, %57 : vector<8x1xf32>
    %59 = vector.broadcast %49 : vector<8x1xf32> to vector<8x64xf32>
    %60 = arith.subf %45, %59 : vector<8x64xf32>
    %cst_18 = arith.constant 9.99999974E-6 : f32
    %61 = vector.broadcast %cst_18 : f32 to vector<8x1xf32>
    %62 = arith.addf %58, %61 : vector<8x1xf32>
    %63 = math.rsqrt %62 : vector<8x1xf32>
    %64 = vector.broadcast %63 : vector<8x1xf32> to vector<8x64xf32>
    %65 = arith.mulf %60, %64 : vector<8x64xf32>
    %66 = vector.broadcast %5 : vector<1x64xf32> to vector<8x64xf32>
    %67 = arith.mulf %65, %66 : vector<8x64xf32>
    %68 = vector.broadcast %6 : vector<1x64xf32> to vector<8x64xf32>
    %69 = arith.addf %67, %68 : vector<8x64xf32>
    %cst_19 = arith.constant 0.000000e+00 : f32
    %70 = vector.broadcast %cst_19 : f32 to vector<8x64xf32>
    %71 = arith.maximumf %69, %70 : vector<8x64xf32>
    %72 = vector.broadcast %7 : vector<1x64xf32> to vector<8x64xf32>
    %73 = arith.mulf %71, %72 : vector<8x64xf32>
    %cst_20 = arith.constant dense<0.000000e+00> : vector<8xf32>
    %74 = vector.multi_reduction <add>, %73, %cst_20 [1] : vector<8x64xf32> to vector<8xf32>
    %75 = vector.shape_cast %74 : vector<8xf32> to vector<8x1xf32>
    %76 = vector.broadcast %8 : vector<1x1xf32> to vector<8x1xf32>
    %77 = arith.addf %75, %76 : vector<8x1xf32>
    %c0_21 = arith.constant 0 : index
    %c0_22 = arith.constant 0 : index
    %78 = vector.load %arg5[%c0_21, %c0_22] : memref<8x1xf32, #tpu.memory_space<vmem>>, vector<8x1xf32>
    tpu.vector_store %arg5[%c0_21, %c0_22], %77 {strides = array<i32>} : memref<8x1xf32, #tpu.memory_space<vmem>>, vector<8x1xf32>,
    return
  }
  func.func @transform_0(%arg0: i32) -> (i32, i32) {
    %c0_i32 = arith.constant 0 : i32
    %c0_i32_0 = arith.constant 0 : i32
    return %arg0, %c0_i32 : i32, i32
  }
  func.func @transform_1(%arg0: i32) -> (i32, i32) {
    %c0_i32 = arith.constant 0 : i32
    %c0_i32_0 = arith.constant 0 : i32
    %c0_i32_1 = arith.constant 0 : i32
    return %c0_i32, %c0_i32_0 : i32, i32
  }
  func.func @transform_2(%arg0: i32) -> (i32, i32) {
    %c0_i32 = arith.constant 0 : i32
    %c0_i32_0 = arith.constant 0 : i32
    %c0_i32_1 = arith.constant 0 : i32
    return %c0_i32, %c0_i32_0 : i32, i32
  }
  func.func @transform_3(%arg0: i32) -> (i32, i32) {
    %c0_i32 = arith.constant 0 : i32
    %c0_i32_0 = arith.constant 0 : i32
    %c0_i32_1 = arith.constant 0 : i32
    return %c0_i32, %c0_i32_0 : i32, i32
  }
  func.func @transform_4(%arg0: i32) -> (i32, i32) {
    %c0_i32 = arith.constant 0 : i32
    %c0_i32_0 = arith.constant 0 : i32
    return %arg0, %c0_i32 : i32, i32
  }
}

</mosaic_0001>

<llo_original>
// kernel: tpu_custom_call.1
$region0: #{tpu_custom_call.1}
  #allocation0 [shape = 'u32[]', space=smem, size = 0x4, offset = 0x4, fixed_abs, tag = 'smem constant byte address 0x4 - core index']
  #allocation1 [shape = 'u32[144,128]{1,0:T(1,128)}', space=vmem, size = 0x12000, scoped, tag = 'internal scratch']
  %s0 = inlined_call_operand.hbm [shape: f32[8,32], index: 0, kind: input, shape index: {}]
  %s1 = inlined_call_operand.hbm [shape: bf16[32,64], index: 1, kind: input, shape index: {}]
  %s2 = inlined_call_operand.hbm [shape: bf16[64,64], index: 2, kind: input, shape index: {}]
  %s3 = inlined_call_operand.hbm [shape: f32[8,64], index: 3, kind: input, shape index: {}]
  %s4 = inlined_call_operand.vmem [shape: f32[8,1], index: 4, kind: output, shape index: {}]
  %s5 = sld [smem:[#allocation0]]
  $region42: #{tpu_custom_call.1} parent=0
    _
  %s7 = ssub.s32 1, %s5
  %s8 = scalar_select 0, %s7, %s5
  $region1: #{tpu_custom_call.1} parent=0
    #allocation2 [shape = 'u8[4096]{0}', space=vmem, size = 0x1000, scoped, tag = 'input window, operand 0, single buffered']
    #allocation3 [shape = 's32[1]{0}', space=sflag, size = 0x4, scoped, tag = 'scoped memory for tpu_custom_call.1']
    #allocation4 [shape = 'u8[8192]{0}', space=vmem, size = 0x2000, scoped, tag = 'input window, operand 1, single buffered']
    #allocation5 [shape = 's32[1]{0}', space=sflag, size = 0x4, scoped, tag = 'scoped memory for tpu_custom_call.1']
    #allocation6 [shape = 'u8[16384]{0}', space=vmem, size = 0x4000, scoped, tag = 'input window, operand 2, single buffered']
    #allocation7 [shape = 'u8[4096]{0}', space=vmem, size = 0x1000, scoped, tag = 'input window, operand 3, single buffered']
    #allocation8 [shape = 's32[1]{0}', space=sflag, size = 0x4, scoped, tag = 'scoped memory for tpu_custom_call.1']
    %9 = vsyncpa [#allocation3], 0
    %10 = vsyncpa [#allocation5], 0
    %11 = vsyncpa [#allocation8], 0
    // Predicated region
    $region2: #{tpu_custom_call.1} parent=1 // pred_check
      _
    $region3: #{tpu_custom_call.1} parent=1 // pred_check_branch
      %13 = sbr.rel (0) target = $region5
    $region4: #{tpu_custom_call.1} parent=1 // pred_region
      %s15 = ssub.s32 128, 128
      %16 = vsyncadd [#allocation3], %s15
      %s18 = sshll.u32 [#allocation2], 4
      %s19 = int_to_ptr.vmem [resolvable:$true] %s18
      %21 = dma.hbm_to_vmem [thread:$0]  %s0, 128, %s19, [#allocation3]
    $region5: #{tpu_custom_call.1} parent=1 // pred_fallthru
      _
    // Predicated region
    $region6: #{tpu_custom_call.1} parent=1 // pred_check
      _
    $region7: #{tpu_custom_call.1} parent=1 // pred_check_branch
      %23 = sbr.rel (0) target = $region9
    $region8: #{tpu_custom_call.1} parent=1 // pred_region
      %s25 = ssub.s32 256, 256
      %26 = vsyncadd [#allocation5], %s25
      %s27 = sshll.u32 [#allocation4], 4
      %s28 = int_to_ptr.vmem [resolvable:$true] %s27
      %33 = dma.hbm_to_vmem [thread:$0]  %s1, 256, %s28, [#allocation5], 64, 64, 4
    $region9: #{tpu_custom_call.1} parent=1 // pred_fallthru
      _
    // Predicated region
    $region10: #{tpu_custom_call.1} parent=1 // pred_check
      _
    $region11: #{tpu_custom_call.1} parent=1 // pred_check_branch
      %35 = sbr.rel (0) target = $region13
    $region12: #{tpu_custom_call.1} parent=1 // pred_region
      %s37 = ssub.s32 512, 512
      %38 = vsyncadd [#allocation5], %s37
      %s39 = sshll.u32 [#allocation6], 4
      %s40 = int_to_ptr.vmem [resolvable:$true] %s39
      %45 = dma.hbm_to_vmem [thread:$0]  %s2, 512, %s40, [#allocation5], 64, 64, 4
    $region13: #{tpu_custom_call.1} parent=1 // pred_fallthru
      _
    // Predicated region
    $region14: #{tpu_custom_call.1} parent=1 // pred_check
      _
    $region15: #{tpu_custom_call.1} parent=1 // pred_check_branch
      %47 = sbr.rel (0) target = $region17
    $region16: #{tpu_custom_call.1} parent=1 // pred_region
      %s49 = ssub.s32 128, 128
      %50 = vsyncadd [#allocation8], %s49
      %s52 = sshll.u32 [#allocation7], 4
      %s53 = int_to_ptr.vmem [resolvable:$true] %s52
      %55 = dma.hbm_to_vmem [thread:$0]  %s3, 128, %s53, [#allocation8]
    $region17: #{tpu_custom_call.1} parent=1 // pred_fallthru
      _
    // Predicated region
    $region18: #{tpu_custom_call.1} parent=1 // pred_check
      _
    $region19: #{tpu_custom_call.1} parent=1 // pred_check_branch
      %57 = sbr.rel (0) target = $region21
    $region20: #{tpu_custom_call.1} parent=1 // pred_region
      %58 = dma.done [#allocation3], 128
    $region21: #{tpu_custom_call.1} parent=1 // pred_fallthru
      _
    // Predicated region
    $region22: #{tpu_custom_call.1} parent=1 // pred_check
      _
    $region23: #{tpu_custom_call.1} parent=1 // pred_check_branch
      %60 = sbr.rel (0) target = $region25
    $region24: #{tpu_custom_call.1} parent=1 // pred_region
      %61 = dma.done [#allocation5], 256
    $region25: #{tpu_custom_call.1} parent=1 // pred_fallthru
      _
    // Predicated region
    $region26: #{tpu_custom_call.1} parent=1 // pred_check
      _
    $region27: #{tpu_custom_call.1} parent=1 // pred_check_branch
      %63 = sbr.rel (0) target = $region29
    $region28: #{tpu_custom_call.1} parent=1 // pred_region
      %64 = dma.done [#allocation5], 512
    $region29: #{tpu_custom_call.1} parent=1 // pred_fallthru
      _
    // Predicated region
    $region30: #{tpu_custom_call.1} parent=1 // pred_check
      _
    $region31: #{tpu_custom_call.1} parent=1 // pred_check_branch
      %66 = sbr.rel (0) target = $region33
    $region32: #{tpu_custom_call.1} parent=1 // pred_region
      %67 = dma.done [#allocation8], 128
    $region33: #{tpu_custom_call.1} parent=1 // pred_fallthru
      _
    %v69 = vld [vmem:[#allocation7] sm:$0xff]
    %v70 = vld [vmem:[#allocation2] sm:$0xff]
    %v71 = vpack.c.bf16 %v70, %v70
    %v72 = vld [vmem:[#allocation4] sm:$0xf]
    %v73 = vld [vmem:[#allocation4 + $0x4] sm:$0xf]
    %v74 = vld [vmem:[#allocation4 + $0x8] sm:$0xf]
    %v75 = vld [vmem:[#allocation4 + $0xc] sm:$0xf]
    %v76 = vlaneseq
    %v77 = vshrl.u32 %v76, 7
    %v78 = vsub.s32 0, %v77
    %v79 = vrot.slane %v69, %v78
    %v84 = vunpack.c.l.b16 %v72
    %v85 = vunpack.c.l.b16 %v73
    %v86 = vunpack.c.l.b16 %v74
    %v87 = vunpack.c.l.b16 %v75
    %v88 = vpack.c.b16 %v85, %v84
    %v89 = vpack.c.b16 %v87, %v86
    %vm92 = vcmask 261120
    %v94 = vsel %vm92, %v71, 0
    %96 = vmatprep.subr.bf16.mxu0 0
    %97 = vmatpush1.bf16.msra.mxu0 0
    %98 = vmatprep.subr.bf16.mxu0 0
    %99 = vmatpush1.bf16.msra.mxu0 0
    %100 = vmatprep.subr.bf16.mxu0 0
    %101 = vmatpush1.bf16.msra.mxu0 0
    %102 = vmatprep.subr.bf16.mxu0 0
    %103 = vmatpush1.bf16.msra.mxu0 0
    %104 = vmatprep.subr.bf16.mxu0 0
    %105 = vmatpush1.bf16.msra.mxu0 0
    %106 = vmatprep.subr.bf16.mxu0 0
    %107 = vmatpush1.bf16.msra.mxu0 0
    %108 = vmatprep.subr.bf16.mxu0 0
    %109 = vmatpush1.bf16.msra.mxu0 %v89
    %110 = vmatprep.subr.bf16.mxu0 0
    %111 = vmatpush1.bf16.msra.mxu0 %v88
    %112 = vmatprep.subr.bf16.mxu0 0
    %113 = vmatpush2.bf16.msra.mxu0 0
    %114 = vmatprep.subr.bf16.mxu0 0
    %115 = vmatpush2.bf16.msra.mxu0 0
    %116 = vmatprep.subr.bf16.mxu0 0
    %117 = vmatpush2.bf16.msra.mxu0 0
    %118 = vmatprep.subr.bf16.mxu0 0
    %119 = vmatpush2.bf16.msra.mxu0 0
    %120 = vmatprep.subr.bf16.mxu0 0
    %121 = vmatpush2.bf16.msra.mxu0 0
    %122 = vmatprep.subr.bf16.mxu0 0
    %123 = vmatpush2.bf16.msra.mxu0 0
    %124 = vmatprep.subr.bf16.mxu0 0
    %125 = vmatpush2.bf16.msra.mxu0 0
    %126 = vmatprep.subr.bf16.mxu0 0
    %127 = vmatpush2.bf16.msra.mxu0 0
    %128 = vmatprep.mubr.bf16.mxu0 0
    %129 = vmatmul.mubr.bf16.gmra.mxu0 %v94
    %v130 = vpop.f32.mrf.mxu0
    %v131 = vadd.f32 %v79, %v130
    %v132 = vpop.f32.mrf.mxu0
    %v133 = vpop.f32.mrf.mxu0
    %v134 = vpop.f32.mrf.mxu0
    %135 = vdwg.mxu0
    %vm136 = vcmask 523264
    %v137 = vsel %vm136, %v131, 0.0
    %138 = vadd.xlane.f32.xlu0 %v137
    %v139 = vpop.xlane.xlu0 %138
    %v140 = vrcp.pop 64.0
    %v141 = vmul.f32 %v139, %v140
    %v142 = vsub.f32 %v131, %v141
    %v143 = vmul.f32 %v142, %v142
    %v144 = vsel %vm136, %v143, 0.0
    %145 = vadd.xlane.f32.xlu0 %v144
    %v146 = vpop.xlane.xlu0 %145
    %v147 = vmul.f32 %v146, %v140
    %v148 = vadd.f32 %v147, 1e-05
    %v149 = vrsqrt.pop %v148
    %v150 = vmul.f32 %v142, %v149
    %v151 = vlaneseq
    %v152 = vshrl.u32 %v151, 7
    %v153 = vsub.s32 1, %v152
    %v154 = vrot.slane %v69, %v153
    %v155 = vmul.f32 %v150, %v154
    %v156 = vlaneseq
    %v157 = vshrl.u32 %v156, 7
    %v158 = vsub.s32 2, %v157
    %v159 = vrot.slane %v69, %v158
    %v160 = vadd.f32 %v155, %v159
    %v161 = vmax.f32 %v160, 0.0
    %v162 = vpack.c.bf16 %v161, %v161
    %v163 = vld [vmem:[#allocation6] sm:$0xf]
    %v164 = vld [vmem:[#allocation6 + $0x4] sm:$0xf]
    %v165 = vld [vmem:[#allocation6 + $0x8] sm:$0xf]
    %v166 = vld [vmem:[#allocation6 + $0xc] sm:$0xf]
    %v167 = vld [vmem:[#allocation6 + $0x10] sm:$0xf]
    %v168 = vld [vmem:[#allocation6 + $0x14] sm:$0xf]
    %v169 = vld [vmem:[#allocation6 + $0x18] sm:$0xf]
    %v170 = vld [vmem:[#allocation6 + $0x1c] sm:$0xf]
    %v171 = vlaneseq
    %v172 = vshrl.u32 %v171, 7
    %v173 = vsub.s32 3, %v172
    %v174 = vrot.slane %v69, %v173
    %v183 = vunpack.c.l.b16 %v163
    %v184 = vunpack.c.l.b16 %v164
    %v185 = vunpack.c.l.b16 %v165
    %v186 = vunpack.c.l.b16 %v166
    %v187 = vunpack.c.l.b16 %v167
    %v188 = vunpack.c.l.b16 %v168
    %v189 = vunpack.c.l.b16 %v169
    %v190 = vunpack.c.l.b16 %v170
    %v191 = vpack.c.b16 %v184, %v183
    %v192 = vpack.c.b16 %v186, %v185
    %v193 = vpack.c.b16 %v188, %v187
    %v194 = vpack.c.b16 %v190, %v189
    %v200 = vsel %vm136, %v162, 0
    %202 = vmatprep.subr.bf16.mxu0 0
    %203 = vmatpush1.bf16.msra.mxu0 0
    %204 = vmatprep.subr.bf16.mxu0 0
    %205 = vmatpush1.bf16.msra.mxu0 0
    %206 = vmatprep.subr.bf16.mxu0 0
    %207 = vmatpush1.bf16.msra.mxu0 0
    %208 = vmatprep.subr.bf16.mxu0 0
    %209 = vmatpush1.bf16.msra.mxu0 0
    %210 = vmatprep.subr.bf16.mxu0 0
    %211 = vmatpush1.bf16.msra.mxu0 %v194
    %212 = vmatprep.subr.bf16.mxu0 0
    %213 = vmatpush1.bf16.msra.mxu0 %v193
    %214 = vmatprep.subr.bf16.mxu0 0
    %215 = vmatpush1.bf16.msra.mxu0 %v192
    %216 = vmatprep.subr.bf16.mxu0 0
    %217 = vmatpush1.bf16.msra.mxu0 %v191
    %218 = vmatprep.subr.bf16.mxu0 0
    %219 = vmatpush2.bf16.msra.mxu0 0
    %220 = vmatprep.subr.bf16.mxu0 0
    %221 = vmatpush2.bf16.msra.mxu0 0
    %222 = vmatprep.subr.bf16.mxu0 0
    %223 = vmatpush2.bf16.msra.mxu0 0
    %224 = vmatprep.subr.bf16.mxu0 0
    %225 = vmatpush2.bf16.msra.mxu0 0
    %226 = vmatprep.subr.bf16.mxu0 0
    %227 = vmatpush2.bf16.msra.mxu0 0
    %228 = vmatprep.subr.bf16.mxu0 0
    %229 = vmatpush2.bf16.msra.mxu0 0
    %230 = vmatprep.subr.bf16.mxu0 0
    %231 = vmatpush2.bf16.msra.mxu0 0
    %232 = vmatprep.subr.bf16.mxu0 0
    %233 = vmatpush2.bf16.msra.mxu0 0
    %234 = vmatprep.mubr.bf16.mxu0 0
    %235 = vmatmul.mubr.bf16.gmra.mxu0 %v200
    %v236 = vpop.f32.mrf.mxu0
    %v237 = vadd.f32 %v174, %v236
    %v238 = vpop.f32.mrf.mxu0
    %v239 = vpop.f32.mrf.mxu0
    %v240 = vpop.f32.mrf.mxu0
    %241 = vdwg.mxu0
    %v242 = vsel %vm136, %v237, 0.0
    %243 = vadd.xlane.f32.xlu0 %v242
    %v244 = vpop.xlane.xlu0 %243
    %v245 = vmul.f32 %v244, %v140
    %v246 = vsub.f32 %v237, %v245
    %v247 = vmul.f32 %v246, %v246
    %v248 = vsel %vm136, %v247, 0.0
    %249 = vadd.xlane.f32.xlu0 %v248
    %v250 = vpop.xlane.xlu0 %249
    %v251 = vmul.f32 %v250, %v140
    %v252 = vadd.f32 %v251, 1e-05
    %v253 = vrsqrt.pop %v252
    %v254 = vmul.f32 %v246, %v253
    %v255 = vlaneseq
    %v256 = vshrl.u32 %v255, 7
    %v257 = vsub.s32 4, %v256
    %v258 = vrot.slane %v69, %v257
    %v259 = vmul.f32 %v254, %v258
    %v260 = vlaneseq
    %v261 = vshrl.u32 %v260, 7
    %v262 = vsub.s32 5, %v261
    %v263 = vrot.slane %v69, %v262
    %v264 = vadd.f32 %v259, %v263
    %v265 = vmax.f32 %v264, 0.0
    %v266 = vlaneseq
    %v267 = vshrl.u32 %v266, 7
    %v268 = vsub.s32 6, %v267
    %v269 = vrot.slane %v69, %v268
    %v270 = vmul.f32 %v265, %v269
    %v271 = vsel %vm136, %v270, 0.0
    %272 = vadd.xlane.f32.xlu0 %v271
    %v273 = vpop.xlane.xlu0 %272
    %v274 = vlaneseq
    %v275 = vshrl.u32 %v274, 7
    %v276 = vsub.s32 7, %v275
    %v277 = vrot.slane %v69, %v276
    %v278 = vadd.f32 %v273, %v277
    %vm279 = vcmask 7168
    %280 = vst.msk [vmem:[%s4] sm:$0xff] %vm279, %v278
    // Predicated region
    $region34: #{tpu_custom_call.1} parent=1 // pred_check
      _
    $region35: #{tpu_custom_call.1} parent=1 // pred_check_branch
      %282 = sbr.rel (0) target = $region37
    $region36: #{tpu_custom_call.1} parent=1 // pred_region
      _
    $region37: #{tpu_custom_call.1} parent=1 // pred_fallthru
      _
    // Predicated region
    $region38: #{tpu_custom_call.1} parent=1 // pred_check
      _
    $region39: #{tpu_custom_call.1} parent=1 // pred_check_branch
      %284 = sbr.rel (0) target = $region41
    $region40: #{tpu_custom_call.1} parent=1 // pred_region
      _
    $region41: #{tpu_custom_call.1} parent=1 // pred_fallthru
      _
    %285 = vsyncpa [#allocation3], 1
    %286 = vsyncpa [#allocation5], 1
    %287 = vsyncpa [#allocation8], 1

</llo_original>
